<compile_context>
chip_gen: v7x
topology: tpu7x:2x2x1
jax: 0.10.0
libtpu: 0.0.40
codegen_flags: <defaults>
</compile_context>

<pallas_src>
import functools

import jax
import jax.numpy as jnp
from jax.experimental import pallas as pl
from jax.experimental.pallas import tpu as pltpu

IN_FEATURES = 10          # ['Age', 'Gender', 'Tenure', ... 'ContractType_Two-Year']
HIDDEN = (64, 32, 16)
OUT_FEATURES = 1


def _mlp_kernel(xT_ref,
                w1_ref, b1_ref,
                w2_ref, b2_ref,
                w3_ref, b3_ref,
                w4_ref, b4_ref,
                o_ref):
    """Whole MLP forward for one batch tile, fused in VMEM (batch on lanes)."""
    xT = xT_ref[...]                                  # (10, tb)  f32

    # h^T = W @ x^T + b ; biases are (out, 1) so they broadcast across lanes.
    h1 = jnp.dot(w1_ref[...], xT, preferred_element_type=jnp.float32) + b1_ref[...]
    h1 = jnp.maximum(h1, 0.0)                         # (64, tb)  ReLU (Dropout -> id)

    h2 = jnp.dot(w2_ref[...], h1, preferred_element_type=jnp.float32) + b2_ref[...]
    h2 = jnp.maximum(h2, 0.0)                         # (32, tb)  ReLU (Dropout -> id)

    h3 = jnp.dot(w3_ref[...], h2, preferred_element_type=jnp.float32) + b3_ref[...]
    h3 = jnp.maximum(h3, 0.0)                         # (16, tb)  ReLU

    logits = jnp.dot(w4_ref[...], h3, preferred_element_type=jnp.float32) + b4_ref[...]
    o_ref[...] = jax.nn.sigmoid(logits)               # (1, tb)  lane-dense store


@functools.partial(jax.jit, static_argnames=("block_batch",))
def ann_forward(x, params, *, block_batch=512):
    """x: (B, 10) float32, any B. Returns (B, 1) float32 probabilities."""
    (w1, b1), (w2, b2), (w3, b3), (w4, b4) = params
    B = x.shape[0]

    # Batch tile: multiple of 128 so the output store is lane-dense / unmasked.
    tb = max(128, (block_batch // 128) * 128)
    num_tiles = -(-B // tb)                           # cdiv
    Bp = num_tiles * tb
    if Bp != B:
        x = jnp.pad(x, ((0, Bp - B), (0, 0)))         # padded rows sliced off below
    xT = x.T                                          # (10, Bp) — batch on lanes

    # Weights/biases are small, passed whole; constant block index keeps them
    # VMEM-resident across all grid steps.
    full = lambda arr: pl.BlockSpec(arr.shape, lambda i: (0, 0))

    out = pl.pallas_call(
        _mlp_kernel,
        out_shape=jax.ShapeDtypeStruct((1, Bp), jnp.float32),
        grid_spec=pltpu.PrefetchScalarGridSpec(
            num_scalar_prefetch=0,
            grid=(num_tiles,),
            in_specs=[
                pl.BlockSpec((IN_FEATURES, tb), lambda i: (0, i)),
                full(w1), full(b1),
                full(w2), full(b2),
                full(w3), full(b3),
                full(w4), full(b4),
            ],
            out_specs=pl.BlockSpec((1, tb), lambda i: (0, i)),
        ),
        compiler_params=pltpu.CompilerParams(
            dimension_semantics=("parallel",)),       # megacore-shardable on v7x
    )(xT, w1, b1, w2, b2, w3, b3, w4, b4)

    return out[0, :B].reshape(B, OUT_FEATURES)


def init_params(key):
    """Deterministic init mirroring nn.Linear (weights stored PyTorch-style (out, in))."""
    dims = (IN_FEATURES,) + HIDDEN + (OUT_FEATURES,)
    params = []
    for i in range(len(dims) - 1):
        fan_in, fan_out = dims[i], dims[i + 1]
        key, kw, kb = jax.random.split(key, 3)
        bound = float(fan_in) ** -0.5
        w = jax.random.uniform(kw, (fan_out, fan_in), jnp.float32, -bound, bound)
        b = jax.random.uniform(kb, (fan_out, 1), jnp.float32, -bound, bound)
        params.append((w, b))
    return params


def reference_forward(x, params):
    """Plain-JAX reference for correctness check."""
    h = x
    n = len(params)
    for i, (w, b) in enumerate(params):
        h = h @ w.T + b[:, 0]
        if i < n - 1:
            h = jnp.maximum(h, 0.0)                   # ReLU (Dropout -> identity)
    return jax.nn.sigmoid(h)


if __name__ == "__main__":
    key = jax.random.PRNGKey(0)
    key, kx1, kx2 = jax.random.split(key, 3)
    params = init_params(key)

    # Small batch (exercises the padding path; grid of 1 tile).
    batch = 16
    x = jax.random.normal(kx1, (batch, IN_FEATURES), jnp.float32)
    out = jax.block_until_ready(ann_forward(x, params))
    ref = reference_forward(x, params)
    assert out.shape == (batch, OUT_FEATURES)
    assert jnp.allclose(out, ref, atol=1e-5, rtol=1e-5), "mismatch vs reference (small)"

    # Non-multiple batch with a smaller tile (exercises grid > 1 + padding).
    batch2 = 300
    x2 = jax.random.normal(kx2, (batch2, IN_FEATURES), jnp.float32)
    out2 = jax.block_until_ready(ann_forward(x2, params, block_batch=128))
    ref2 = reference_forward(x2, params)
    assert out2.shape == (batch2, OUT_FEATURES)
    assert jnp.allclose(out2, ref2, atol=1e-5, rtol=1e-5), "mismatch vs reference (tiled)"

    print("KERNEL_OK")
</pallas_src>

<mosaic_0001>
module attributes {stable_mosaic.version = 11 : i64} {
  func.func @_mlp_kernel(%arg0: i32, %arg1: memref<10x512xf32, #tpu.memory_space<vmem>>, %arg2: memref<64x10xf32, #tpu.memory_space<vmem>>, %arg3: memref<64x1xf32, #tpu.memory_space<vmem>>, %arg4: memref<32x64xf32, #tpu.memory_space<vmem>>, %arg5: memref<32x1xf32, #tpu.memory_space<vmem>>, %arg6: memref<16x32xf32, #tpu.memory_space<vmem>>, %arg7: memref<16x1xf32, #tpu.memory_space<vmem>>, %arg8: memref<1x16xf32, #tpu.memory_space<vmem>>, %arg9: memref<1x1xf32, #tpu.memory_space<vmem>>, %arg10: memref<1x512xf32, #tpu.memory_space<vmem>>) attributes {dimension_semantics = [#tpu.dimension_semantics<parallel>], iteration_bounds = array<i64: 1>, scalar_prefetch = 0 : i64, scratch_operands = 0 : i64, tpu.core_type = #tpu.core_type<tc>, window_params = [{transform_indices = @transform_0, window_bounds = array<i64: 10, 512>}, {pipeline_mode = #tpu.pipeline_mode<synchronous>, transform_indices = @transform_1, window_bounds = array<i64: 64, 10>}, {pipeline_mode = #tpu.pipeline_mode<synchronous>, transform_indices = @transform_2, window_bounds = array<i64: 64, 1>}, {pipeline_mode = #tpu.pipeline_mode<synchronous>, transform_indices = @transform_3, window_bounds = array<i64: 32, 64>}, {pipeline_mode = #tpu.pipeline_mode<synchronous>, transform_indices = @transform_4, window_bounds = array<i64: 32, 1>}, {pipeline_mode = #tpu.pipeline_mode<synchronous>, transform_indices = @transform_5, window_bounds = array<i64: 16, 32>}, {pipeline_mode = #tpu.pipeline_mode<synchronous>, transform_indices = @transform_6, window_bounds = array<i64: 16, 1>}, {pipeline_mode = #tpu.pipeline_mode<synchronous>, transform_indices = @transform_7, window_bounds = array<i64: 1, 16>}, {pipeline_mode = #tpu.pipeline_mode<synchronous>, transform_indices = @transform_8, window_bounds = array<i64: 1, 1>}, {transform_indices = @transform_9, window_bounds = array<i64: 1, 512>}]} {
    %c0 = arith.constant 0 : index
    %c0_0 = arith.constant 0 : index
    %0 = vector.load %arg1[%c0, %c0_0] : memref<10x512xf32, #tpu.memory_space<vmem>>, vector<10x512xf32>
    %c0_1 = arith.constant 0 : index
    %c0_2 = arith.constant 0 : index
    %1 = vector.load %arg2[%c0_1, %c0_2] : memref<64x10xf32, #tpu.memory_space<vmem>>, vector<64x10xf32>
    %cst = arith.constant dense<0.000000e+00> : vector<64x512xf32>
    %2 = tpu.matmul %1, %0, %cst {dimension_numbers = #tpu.dot_dimension_numbers<[1], [0], [0], [1], [0, 0, 1, 1], [], []>} : vector<64x10xf32>, vector<10x512xf32>, vector<64x512xf32> -> vector<64x512xf32>
    %c0_3 = arith.constant 0 : index
    %c0_4 = arith.constant 0 : index
    %3 = vector.load %arg3[%c0_3, %c0_4] : memref<64x1xf32, #tpu.memory_space<vmem>>, vector<64x1xf32>
    %4 = vector.broadcast %3 : vector<64x1xf32> to vector<64x512xf32>
    %5 = arith.addf %2, %4 : vector<64x512xf32>
    %cst_5 = arith.constant 0.000000e+00 : f32
    %6 = vector.broadcast %cst_5 : f32 to vector<64x512xf32>
    %7 = arith.maximumf %5, %6 : vector<64x512xf32>
    %c0_6 = arith.constant 0 : index
    %c0_7 = arith.constant 0 : index
    %8 = vector.load %arg4[%c0_6, %c0_7] : memref<32x64xf32, #tpu.memory_space<vmem>>, vector<32x64xf32>
    %cst_8 = arith.constant dense<0.000000e+00> : vector<32x512xf32>
    %9 = tpu.matmul %8, %7, %cst_8 {dimension_numbers = #tpu.dot_dimension_numbers<[1], [0], [0], [1], [0, 0, 1, 1], [], []>} : vector<32x64xf32>, vector<64x512xf32>, vector<32x512xf32> -> vector<32x512xf32>
    %c0_9 = arith.constant 0 : index
    %c0_10 = arith.constant 0 : index
    %10 = vector.load %arg5[%c0_9, %c0_10] : memref<32x1xf32, #tpu.memory_space<vmem>>, vector<32x1xf32>
    %11 = vector.broadcast %10 : vector<32x1xf32> to vector<32x512xf32>
    %12 = arith.addf %9, %11 : vector<32x512xf32>
    %cst_11 = arith.constant 0.000000e+00 : f32
    %13 = vector.broadcast %cst_11 : f32 to vector<32x512xf32>
    %14 = arith.maximumf %12, %13 : vector<32x512xf32>
    %c0_12 = arith.constant 0 : index
    %c0_13 = arith.constant 0 : index
    %15 = vector.load %arg6[%c0_12, %c0_13] : memref<16x32xf32, #tpu.memory_space<vmem>>, vector<16x32xf32>
    %cst_14 = arith.constant dense<0.000000e+00> : vector<16x512xf32>
    %16 = tpu.matmul %15, %14, %cst_14 {dimension_numbers = #tpu.dot_dimension_numbers<[1], [0], [0], [1], [0, 0, 1, 1], [], []>} : vector<16x32xf32>, vector<32x512xf32>, vector<16x512xf32> -> vector<16x512xf32>
    %c0_15 = arith.constant 0 : index
    %c0_16 = arith.constant 0 : index
    %17 = vector.load %arg7[%c0_15, %c0_16] : memref<16x1xf32, #tpu.memory_space<vmem>>, vector<16x1xf32>
    %18 = vector.broadcast %17 : vector<16x1xf32> to vector<16x512xf32>
    %19 = arith.addf %16, %18 : vector<16x512xf32>
    %cst_17 = arith.constant 0.000000e+00 : f32
    %20 = vector.broadcast %cst_17 : f32 to vector<16x512xf32>
    %21 = arith.maximumf %19, %20 : vector<16x512xf32>
    %c0_18 = arith.constant 0 : index
    %c0_19 = arith.constant 0 : index
    %22 = vector.load %arg8[%c0_18, %c0_19] : memref<1x16xf32, #tpu.memory_space<vmem>>, vector<1x16xf32>
    %cst_20 = arith.constant dense<0.000000e+00> : vector<1x512xf32>
    %23 = tpu.matmul %22, %21, %cst_20 {dimension_numbers = #tpu.dot_dimension_numbers<[1], [0], [0], [1], [0, 0, 1, 1], [], []>} : vector<1x16xf32>, vector<16x512xf32>, vector<1x512xf32> -> vector<1x512xf32>
    %c0_21 = arith.constant 0 : index
    %c0_22 = arith.constant 0 : index
    %24 = vector.load %arg9[%c0_21, %c0_22] : memref<1x1xf32, #tpu.memory_space<vmem>>, vector<1x1xf32>
    %25 = vector.broadcast %24 : vector<1x1xf32> to vector<1x512xf32>
    %26 = arith.addf %23, %25 : vector<1x512xf32>
    %27 = arith.negf %26 : vector<1x512xf32>
    %28 = math.exp %27 : vector<1x512xf32>
    %cst_23 = arith.constant 1.000000e+00 : f32
    %29 = vector.broadcast %cst_23 : f32 to vector<1x512xf32>
    %30 = arith.addf %29, %28 : vector<1x512xf32>
    %31 = arith.divf %29, %30 : vector<1x512xf32>
    %c0_24 = arith.constant 0 : index
    %c0_25 = arith.constant 0 : index
    %32 = vector.load %arg10[%c0_24, %c0_25] : memref<1x512xf32, #tpu.memory_space<vmem>>, vector<1x512xf32>
    tpu.vector_store %arg10[%c0_24, %c0_25], %31 {strides = array<i32>} : memref<1x512xf32, #tpu.memory_space<vmem>>, vector<1x512xf32>,
    return
  }
  func.func @transform_0(%arg0: i32) -> (i32, i32) {
    %c0_i32 = arith.constant 0 : i32
    %c0_i32_0 = arith.constant 0 : i32
    return %c0_i32, %arg0 : i32, i32
  }
  func.func @transform_1(%arg0: i32) -> (i32, i32) {
    %c0_i32 = arith.constant 0 : i32
    %c0_i32_0 = arith.constant 0 : i32
    %c0_i32_1 = arith.constant 0 : i32
    return %c0_i32, %c0_i32_0 : i32, i32
  }
  func.func @transform_2(%arg0: i32) -> (i32, i32) {
    %c0_i32 = arith.constant 0 : i32
    %c0_i32_0 = arith.constant 0 : i32
    %c0_i32_1 = arith.constant 0 : i32
    return %c0_i32, %c0_i32_0 : i32, i32
  }
  func.func @transform_3(%arg0: i32) -> (i32, i32) {
    %c0_i32 = arith.constant 0 : i32
    %c0_i32_0 = arith.constant 0 : i32
    %c0_i32_1 = arith.constant 0 : i32
    return %c0_i32, %c0_i32_0 : i32, i32
  }
  func.func @transform_4(%arg0: i32) -> (i32, i32) {
    %c0_i32 = arith.constant 0 : i32
    %c0_i32_0 = arith.constant 0 : i32
    %c0_i32_1 = arith.constant 0 : i32
    return %c0_i32, %c0_i32_0 : i32, i32
  }
  func.func @transform_5(%arg0: i32) -> (i32, i32) {
    %c0_i32 = arith.constant 0 : i32
    %c0_i32_0 = arith.constant 0 : i32
    %c0_i32_1 = arith.constant 0 : i32
    return %c0_i32, %c0_i32_0 : i32, i32
  }
  func.func @transform_6(%arg0: i32) -> (i32, i32) {
    %c0_i32 = arith.constant 0 : i32
    %c0_i32_0 = arith.constant 0 : i32
    %c0_i32_1 = arith.constant 0 : i32
    return %c0_i32, %c0_i32_0 : i32, i32
  }
  func.func @transform_7(%arg0: i32) -> (i32, i32) {
    %c0_i32 = arith.constant 0 : i32
    %c0_i32_0 = arith.constant 0 : i32
    %c0_i32_1 = arith.constant 0 : i32
    return %c0_i32, %c0_i32_0 : i32, i32
  }
  func.func @transform_8(%arg0: i32) -> (i32, i32) {
    %c0_i32 = arith.constant 0 : i32
    %c0_i32_0 = arith.constant 0 : i32
    %c0_i32_1 = arith.constant 0 : i32
    return %c0_i32, %c0_i32_0 : i32, i32
  }
  func.func @transform_9(%arg0: i32) -> (i32, i32) {
    %c0_i32 = arith.constant 0 : i32
    %c0_i32_0 = arith.constant 0 : i32
    return %c0_i32, %arg0 : i32, i32
  }
}

</mosaic_0001>

<llo_original>
// kernel: ann_forward.1
$region0: #{ann_forward.1}
  #allocation0 [shape = 'u32[]', space=smem, size = 0x4, offset = 0x4, fixed_abs, tag = 'smem constant byte address 0x4 - core index']
  #allocation1 [shape = 'u32[144,128]{1,0:T(1,128)}', space=vmem, size = 0x12000, scoped, tag = 'internal scratch']
  #allocation2 [shape = 'f32[1,1]{1,0:T(1,128)S(1)}', space=vmem, size = 0x200, scoped, tag = 'scoped memory for ann_forward.1']
  %s0 = inlined_call_operand.vmem [shape: f32[10,512], index: 0, kind: input, shape index: {}]
  %s1 = inlined_call_operand.vmem [shape: f32[64,10], index: 1, kind: input, shape index: {}]
  %s2 = inlined_call_operand.vmem [shape: f32[64,1], index: 2, kind: input, shape index: {}]
  %s3 = inlined_call_operand.vmem [shape: f32[32,64], index: 3, kind: input, shape index: {}]
  %s4 = inlined_call_operand.vmem [shape: f32[32,1], index: 4, kind: input, shape index: {}]
  %s5 = inlined_call_operand.vmem [shape: f32[16,32], index: 5, kind: input, shape index: {}]
  %s6 = inlined_call_operand.vmem [shape: f32[16,1], index: 6, kind: input, shape index: {}]
  %s7 = inlined_call_operand.vmem [shape: f32[1,16], index: 7, kind: input, shape index: {}]
  %s8 = inlined_call_operand.<no memory space> [shape: f32[1,1], index: 8, kind: input, shape index: {}]
  %s9 = inlined_call_operand.vmem [shape: f32[1,512], index: 9, kind: output, shape index: {}]
  %s10 = sld [smem:[#allocation0]]
  $region46: #{ann_forward.1} parent=0
    _
  %s12 = ssub.s32 1, %s10
  %s13 = scalar_select 0, %s12, %s10
  %v14 = vstv %s8
  %15 = vst [vmem:[#allocation2] sm:$0x1] %v14
  // Predicated region
  $region2: #{ann_forward.1} parent=0 // pred_check
    _
  $region3: #{ann_forward.1} parent=0 // pred_check_branch
    %17 = sbr.rel (0) target = $region5
  $region4: #{ann_forward.1} parent=0 // pred_region
    _
  $region5: #{ann_forward.1} parent=0 // pred_fallthru
    _
  // Predicated region
  $region6: #{ann_forward.1} parent=0 // pred_check
    _
  $region7: #{ann_forward.1} parent=0 // pred_check_branch
    %19 = sbr.rel (0) target = $region9
  $region8: #{ann_forward.1} parent=0 // pred_region
    _
  $region9: #{ann_forward.1} parent=0 // pred_fallthru
    _
  // Predicated region
  $region10: #{ann_forward.1} parent=0 // pred_check
    _
  $region11: #{ann_forward.1} parent=0 // pred_check_branch
    %21 = sbr.rel (0) target = $region13
  $region12: #{ann_forward.1} parent=0 // pred_region
    _
  $region13: #{ann_forward.1} parent=0 // pred_fallthru
    _
  // Predicated region
  $region14: #{ann_forward.1} parent=0 // pred_check
    _
  $region15: #{ann_forward.1} parent=0 // pred_check_branch
    %23 = sbr.rel (0) target = $region17
  $region16: #{ann_forward.1} parent=0 // pred_region
    _
  $region17: #{ann_forward.1} parent=0 // pred_fallthru
    _
  // Predicated region
  $region18: #{ann_forward.1} parent=0 // pred_check
    _
  $region19: #{ann_forward.1} parent=0 // pred_check_branch
    %25 = sbr.rel (0) target = $region21
  $region20: #{ann_forward.1} parent=0 // pred_region
    _
  $region21: #{ann_forward.1} parent=0 // pred_fallthru
    _
  // Predicated region
  $region22: #{ann_forward.1} parent=0 // pred_check
    _
  $region23: #{ann_forward.1} parent=0 // pred_check_branch
    %27 = sbr.rel (0) target = $region25
  $region24: #{ann_forward.1} parent=0 // pred_region
    _
  $region25: #{ann_forward.1} parent=0 // pred_fallthru
    _
  // Predicated region
  $region26: #{ann_forward.1} parent=0 // pred_check
    _
  $region27: #{ann_forward.1} parent=0 // pred_check_branch
    %29 = sbr.rel (0) target = $region29
  $region28: #{ann_forward.1} parent=0 // pred_region
    _
  $region29: #{ann_forward.1} parent=0 // pred_fallthru
    _
  // Predicated region
  $region30: #{ann_forward.1} parent=0 // pred_check
    _
  $region31: #{ann_forward.1} parent=0 // pred_check_branch
    %31 = sbr.rel (0) target = $region33
  $region32: #{ann_forward.1} parent=0 // pred_region
    _
  $region33: #{ann_forward.1} parent=0 // pred_fallthru
    _
  // Predicated region
  $region34: #{ann_forward.1} parent=0 // pred_check
    _
  $region35: #{ann_forward.1} parent=0 // pred_check_branch
    %33 = sbr.rel (0) target = $region37
  $region36: #{ann_forward.1} parent=0 // pred_region
    _
  $region37: #{ann_forward.1} parent=0 // pred_fallthru
    _
  %v34 = vld [vmem:[%s0] sm:$0xff]
  %v35 = vld [vmem:[%s0 + $0x8] sm:$0xff]
  %v36 = vld [vmem:[%s0 + $0x10] sm:$0xff]
  %v37 = vld [vmem:[%s0 + $0x18] sm:$0xff]
  %v38 = vld [vmem:[%s0 + $0x20] sm:$0x3]
  %v39 = vld [vmem:[%s0 + $0x28] sm:$0x3]
  %v40 = vld [vmem:[%s0 + $0x30] sm:$0x3]
  %v41 = vld [vmem:[%s0 + $0x38] sm:$0x3]
  %v42 = vld [vmem:[%s1] sm:$0xff]
  %v43 = vld [vmem:[%s1 + $0x8] sm:$0xff]
  %v44 = vld [vmem:[%s1 + $0x10] sm:$0xff]
  %v45 = vld [vmem:[%s1 + $0x18] sm:$0xff]
  %v46 = vld [vmem:[%s1 + $0x20] sm:$0xff]
  %v47 = vld [vmem:[%s1 + $0x28] sm:$0xff]
  %v48 = vld [vmem:[%s1 + $0x30] sm:$0xff]
  %v49 = vld [vmem:[%s1 + $0x38] sm:$0xff]
  %v50 = vld [vmem:[%s2] sm:$0xff]
  %v51 = vld [vmem:[%s2 + $0x8] sm:$0xff]
  %v52 = vld [vmem:[%s2 + $0x10] sm:$0xff]
  %v53 = vld [vmem:[%s2 + $0x18] sm:$0xff]
  %v54 = vld [vmem:[%s2 + $0x20] sm:$0xff]
  %v55 = vld [vmem:[%s2 + $0x28] sm:$0xff]
  %v56 = vld [vmem:[%s2 + $0x30] sm:$0xff]
  %v57 = vld [vmem:[%s2 + $0x38] sm:$0xff]
  %59 = vset.pattern.permute.xlu0 0
  %60 = vperm.xlu0 %59, %v50
  %v61 = vpop.permute.xlu0 %60
  %64 = vset.pattern.permute.xlu0 0
  %65 = vperm.xlu0 %64, %v51
  %v66 = vpop.permute.xlu0 %65
  %69 = vset.pattern.permute.xlu0 0
  %70 = vperm.xlu0 %69, %v52
  %v71 = vpop.permute.xlu0 %70
  %74 = vset.pattern.permute.xlu0 0
  %75 = vperm.xlu0 %74, %v53
  %v76 = vpop.permute.xlu0 %75
  %79 = vset.pattern.permute.xlu0 0
  %80 = vperm.xlu0 %79, %v54
  %v81 = vpop.permute.xlu0 %80
  %84 = vset.pattern.permute.xlu0 0
  %85 = vperm.xlu0 %84, %v55
  %v86 = vpop.permute.xlu0 %85
  %89 = vset.pattern.permute.xlu0 0
  %90 = vperm.xlu0 %89, %v56
  %v91 = vpop.permute.xlu0 %90
  %94 = vset.pattern.permute.xlu0 0
  %95 = vperm.xlu0 %94, %v57
  %v96 = vpop.permute.xlu0 %95
  %vm98 = vcmask 80896
  %v100 = vsel %vm98, %v42, 0
  %v103 = vsel %vm98, %v43, 0
  %v106 = vsel %vm98, %v44, 0
  %v109 = vsel %vm98, %v45, 0
  %v112 = vsel %vm98, %v46, 0
  %v115 = vsel %vm98, %v47, 0
  %v118 = vsel %vm98, %v48, 0
  %v121 = vsel %vm98, %v49, 0
  %vm123 = vcmask 1041408
  %v125 = vsel %vm123, %v38, 0
  %v128 = vsel %vm123, %v39, 0
  %v131 = vsel %vm123, %v40, 0
  %v134 = vsel %vm123, %v41, 0
  %136 = vmatprep.subr.mxu0 %v35
  %137 = vmatpush1.msra.mxu0 %v34
  %138 = vmatprep.subr.mxu0 %v128
  %139 = vmatpush1.msra.mxu0 %v125
  %140 = vmatprep.subr.mxu0 0.0
  %141 = vmatpush1.msra.mxu0 0.0
  %142 = vmatprep.subr.mxu0 0.0
  %143 = vmatpush1.msra.mxu0 0.0
  %144 = vmatprep.subr.mxu0 0.0
  %145 = vmatpush1.msra.mxu0 0.0
  %146 = vmatprep.subr.mxu0 0.0
  %147 = vmatpush1.msra.mxu0 0.0
  %148 = vmatprep.subr.mxu0 0.0
  %149 = vmatpush1.msra.mxu0 0.0
  %150 = vmatprep.subr.mxu0 0.0
  %151 = vmatpush1.msra.mxu0 0.0
  %152 = vmatprep.subr.mxu0 0.0
  %153 = vmatpush1.msra.mxu0 0.0
  %154 = vmatprep.subr.mxu0 0.0
  %155 = vmatpush1.msra.mxu0 0.0
  %156 = vmatprep.subr.mxu0 0.0
  %157 = vmatpush1.msra.mxu0 0.0
  %158 = vmatprep.subr.mxu0 0.0
  %159 = vmatpush1.msra.mxu0 0.0
  %160 = vmatprep.subr.mxu0 0.0
  %161 = vmatpush1.msra.mxu0 0.0
  %162 = vmatprep.subr.mxu0 0.0
  %163 = vmatpush1.msra.mxu0 0.0
  %164 = vmatprep.subr.mxu0 0.0
  %165 = vmatpush1.msra.mxu0 0.0
  %166 = vmatprep.subr.mxu0 0.0
  %167 = vmatpush1.msra.mxu0 0.0
  %168 = vmatprep.subr.mxu0 0.0
  %169 = vmatpush1.msra.mxu0 0.0
  %170 = vmatprep.subr.mxu0 0.0
  %171 = vmatpush1.msra.mxu0 0.0
  %172 = vmatprep.subr.mxu0 0.0
  %173 = vmatpush1.msra.mxu0 0.0
  %174 = vmatprep.subr.mxu0 0.0
  %175 = vmatpush1.msra.mxu0 0.0
  %176 = vmatprep.subr.mxu0 0.0
  %177 = vmatpush1.msra.mxu0 0.0
  %178 = vmatprep.subr.mxu0 0.0
  %179 = vmatpush1.msra.mxu0 0.0
  %180 = vmatprep.subr.mxu0 0.0
  %181 = vmatpush1.msra.mxu0 0.0
  %182 = vmatprep.subr.mxu0 0.0
  %183 = vmatpush1.msra.mxu0 0.0
  %184 = vmatprep.subr.mxu0 0.0
  %185 = vmatpush1.msra.mxu0 0.0
  %186 = vmatprep.subr.mxu0 0.0
  %187 = vmatpush1.msra.mxu0 0.0
  %188 = vmatprep.subr.mxu0 0.0
  %189 = vmatpush1.msra.mxu0 0.0
  %190 = vmatprep.subr.mxu0 0.0
  %191 = vmatpush1.msra.mxu0 0.0
  %192 = vmatprep.subr.mxu0 0.0
  %193 = vmatpush1.msra.mxu0 0.0
  %194 = vmatprep.subr.mxu0 0.0
  %195 = vmatpush1.msra.mxu0 0.0
  %196 = vmatprep.subr.mxu0 0.0
  %197 = vmatpush1.msra.mxu0 0.0
  %198 = vmatprep.subr.mxu0 0.0
  %199 = vmatpush1.msra.mxu0 0.0
  %200 = vmatprep.mubr.f32.mxu0 0.0
  %201 = vmatmul.mubr.f32.gmra.mrb[0].mxu0 %v100
  %v202 = vpop.f32.mrb[0].mxu0
  %v203 = vadd.f32 %v61, %v202
  %v204 = vpop.f32.mrb[0].mxu0
  %v205 = vadd.f32 %v61, %v204
  %206 = vmatprep.mubr.f32.mxu0 0.0
  %207 = vmatmul.mubr.f32.gmra.mrb[0].mxu0 %v103
  %v208 = vpop.f32.mrb[0].mxu0
  %v209 = vadd.f32 %v66, %v208
  %v210 = vpop.f32.mrb[0].mxu0
  %v211 = vadd.f32 %v66, %v210
  %212 = vmatprep.mubr.f32.mxu0 0.0
  %213 = vmatmul.mubr.f32.gmra.mrb[0].mxu0 %v106
  %v214 = vpop.f32.mrb[0].mxu0
  %v215 = vadd.f32 %v71, %v214
  %v216 = vpop.f32.mrb[0].mxu0
  %v217 = vadd.f32 %v71, %v216
  %218 = vmatprep.mubr.f32.mxu0 0.0
  %219 = vmatmul.mubr.f32.gmra.mrb[0].mxu0 %v109
  %v220 = vpop.f32.mrb[0].mxu0
  %v221 = vadd.f32 %v76, %v220
  %v222 = vpop.f32.mrb[0].mxu0
  %v223 = vadd.f32 %v76, %v222
  %224 = vmatprep.mubr.f32.mxu0 0.0
  %225 = vmatmul.mubr.f32.gmra.mrb[0].mxu0 %v112
  %v226 = vpop.f32.mrb[0].mxu0
  %v227 = vadd.f32 %v81, %v226
  %v228 = vpop.f32.mrb[0].mxu0
  %v229 = vadd.f32 %v81, %v228
  %230 = vmatprep.mubr.f32.mxu0 0.0
  %231 = vmatmul.mubr.f32.gmra.mrb[0].mxu0 %v115
  %v232 = vpop.f32.mrb[0].mxu0
  %v233 = vadd.f32 %v86, %v232
  %v234 = vpop.f32.mrb[0].mxu0
  %v235 = vadd.f32 %v86, %v234
  %236 = vmatprep.mubr.f32.mxu0 0.0
  %237 = vmatmul.mubr.f32.gmra.mrb[0].mxu0 %v118
  %v238 = vpop.f32.mrb[0].mxu0
  %v239 = vadd.f32 %v91, %v238
  %v240 = vpop.f32.mrb[0].mxu0
  %v241 = vadd.f32 %v91, %v240
  %242 = vmatprep.mubr.f32.mxu0 0.0
  %243 = vmatmul.mubr.f32.gmra.mrb[0].mxu0 %v121
  %v244 = vpop.f32.mrb[0].mxu0
  %v245 = vadd.f32 %v96, %v244
  %v246 = vpop.f32.mrb[0].mxu0
  %v247 = vadd.f32 %v96, %v246
  %248 = vdwg.mxu0
  %249 = vmatprep.subr.mxu0 %v37
  %250 = vmatpush1.msra.mxu0 %v36
  %251 = vmatprep.subr.mxu0 %v134
  %252 = vmatpush1.msra.mxu0 %v131
  %253 = vmatprep.subr.mxu0 0.0
  %254 = vmatpush1.msra.mxu0 0.0
  %255 = vmatprep.subr.mxu0 0.0
  %256 = vmatpush1.msra.mxu0 0.0
  %257 = vmatprep.subr.mxu0 0.0
  %258 = vmatpush1.msra.mxu0 0.0
  %259 = vmatprep.subr.mxu0 0.0
  %260 = vmatpush1.msra.mxu0 0.0
  %261 = vmatprep.subr.mxu0 0.0
  %262 = vmatpush1.msra.mxu0 0.0
  %263 = vmatprep.subr.mxu0 0.0
  %264 = vmatpush1.msra.mxu0 0.0
  %265 = vmatprep.subr.mxu0 0.0
  %266 = vmatpush1.msra.mxu0 0.0
  %267 = vmatprep.subr.mxu0 0.0
  %268 = vmatpush1.msra.mxu0 0.0
  %269 = vmatprep.subr.mxu0 0.0
  %270 = vmatpush1.msra.mxu0 0.0
  %271 = vmatprep.subr.mxu0 0.0
  %272 = vmatpush1.msra.mxu0 0.0
  %273 = vmatprep.subr.mxu0 0.0
  %274 = vmatpush1.msra.mxu0 0.0
  %275 = vmatprep.subr.mxu0 0.0
  %276 = vmatpush1.msra.mxu0 0.0
  %277 = vmatprep.subr.mxu0 0.0
  %278 = vmatpush1.msra.mxu0 0.0
  %279 = vmatprep.subr.mxu0 0.0
  %280 = vmatpush1.msra.mxu0 0.0
  %281 = vmatprep.subr.mxu0 0.0
  %282 = vmatpush1.msra.mxu0 0.0
  %283 = vmatprep.subr.mxu0 0.0
  %284 = vmatpush1.msra.mxu0 0.0
  %285 = vmatprep.subr.mxu0 0.0
  %286 = vmatpush1.msra.mxu0 0.0
  %287 = vmatprep.subr.mxu0 0.0
  %288 = vmatpush1.msra.mxu0 0.0
  %289 = vmatprep.subr.mxu0 0.0
  %290 = vmatpush1.msra.mxu0 0.0
  %291 = vmatprep.subr.mxu0 0.0
  %292 = vmatpush1.msra.mxu0 0.0
  %293 = vmatprep.subr.mxu0 0.0
  %294 = vmatpush1.msra.mxu0 0.0
  %295 = vmatprep.subr.mxu0 0.0
  %296 = vmatpush1.msra.mxu0 0.0
  %297 = vmatprep.subr.mxu0 0.0
  %298 = vmatpush1.msra.mxu0 0.0
  %299 = vmatprep.subr.mxu0 0.0
  %300 = vmatpush1.msra.mxu0 0.0
  %301 = vmatprep.subr.mxu0 0.0
  %302 = vmatpush1.msra.mxu0 0.0
  %303 = vmatprep.subr.mxu0 0.0
  %304 = vmatpush1.msra.mxu0 0.0
  %305 = vmatprep.subr.mxu0 0.0
  %306 = vmatpush1.msra.mxu0 0.0
  %307 = vmatprep.subr.mxu0 0.0
  %308 = vmatpush1.msra.mxu0 0.0
  %309 = vmatprep.subr.mxu0 0.0
  %310 = vmatpush1.msra.mxu0 0.0
  %311 = vmatprep.subr.mxu0 0.0
  %312 = vmatpush1.msra.mxu0 0.0
  %313 = vmatprep.mubr.f32.mxu0 0.0
  %314 = vmatmul.mubr.f32.gmra.mrb[0].mxu0 %v100
  %v315 = vpop.f32.mrb[0].mxu0
  %v316 = vadd.f32 %v61, %v315
  %v317 = vpop.f32.mrb[0].mxu0
  %v318 = vadd.f32 %v61, %v317
  %319 = vmatprep.mubr.f32.mxu0 0.0
  %320 = vmatmul.mubr.f32.gmra.mrb[0].mxu0 %v103
  %v321 = vpop.f32.mrb[0].mxu0
  %v322 = vadd.f32 %v66, %v321
  %v323 = vpop.f32.mrb[0].mxu0
  %v324 = vadd.f32 %v66, %v323
  %325 = vmatprep.mubr.f32.mxu0 0.0
  %326 = vmatmul.mubr.f32.gmra.mrb[0].mxu0 %v106
  %v327 = vpop.f32.mrb[0].mxu0
  %v328 = vadd.f32 %v71, %v327
  %v329 = vpop.f32.mrb[0].mxu0
  %v330 = vadd.f32 %v71, %v329
  %331 = vmatprep.mubr.f32.mxu0 0.0
  %332 = vmatmul.mubr.f32.gmra.mrb[0].mxu0 %v109
  %v333 = vpop.f32.mrb[0].mxu0
  %v334 = vadd.f32 %v76, %v333
  %v335 = vpop.f32.mrb[0].mxu0
  %v336 = vadd.f32 %v76, %v335
  %337 = vmatprep.mubr.f32.mxu0 0.0
  %338 = vmatmul.mubr.f32.gmra.mrb[0].mxu0 %v112
  %v339 = vpop.f32.mrb[0].mxu0
  %v340 = vadd.f32 %v81, %v339
  %v341 = vpop.f32.mrb[0].mxu0
  %v342 = vadd.f32 %v81, %v341
  %343 = vmatprep.mubr.f32.mxu0 0.0
  %344 = vmatmul.mubr.f32.gmra.mrb[0].mxu0 %v115
  %v345 = vpop.f32.mrb[0].mxu0
  %v346 = vadd.f32 %v86, %v345
  %v347 = vpop.f32.mrb[0].mxu0
  %v348 = vadd.f32 %v86, %v347
  %349 = vmatprep.mubr.f32.mxu0 0.0
  %350 = vmatmul.mubr.f32.gmra.mrb[0].mxu0 %v118
  %v351 = vpop.f32.mrb[0].mxu0
  %v352 = vadd.f32 %v91, %v351
  %v353 = vpop.f32.mrb[0].mxu0
  %v354 = vadd.f32 %v91, %v353
  %355 = vmatprep.mubr.f32.mxu0 0.0
  %356 = vmatmul.mubr.f32.gmra.mrb[0].mxu0 %v121
  %v357 = vpop.f32.mrb[0].mxu0
  %v358 = vadd.f32 %v96, %v357
  %v359 = vpop.f32.mrb[0].mxu0
  %v360 = vadd.f32 %v96, %v359
  %361 = vdwg.mxu0
  %v362 = vmax.f32 %v203, 0.0
  %v363 = vmax.f32 %v205, 0.0
  %v364 = vmax.f32 %v316, 0.0
  %v365 = vmax.f32 %v318, 0.0
  %v366 = vmax.f32 %v209, 0.0
  %v367 = vmax.f32 %v211, 0.0
  %v368 = vmax.f32 %v322, 0.0
  %v369 = vmax.f32 %v324, 0.0
  %v370 = vmax.f32 %v215, 0.0
  %v371 = vmax.f32 %v217, 0.0
  %v372 = vmax.f32 %v328, 0.0
  %v373 = vmax.f32 %v330, 0.0
  %v374 = vmax.f32 %v221, 0.0
  %v375 = vmax.f32 %v223, 0.0
  %v376 = vmax.f32 %v334, 0.0
  %v377 = vmax.f32 %v336, 0.0
  %v378 = vmax.f32 %v227, 0.0
  %v379 = vmax.f32 %v229, 0.0
  %v380 = vmax.f32 %v340, 0.0
  %v381 = vmax.f32 %v342, 0.0
  %v382 = vmax.f32 %v233, 0.0
  %v383 = vmax.f32 %v235, 0.0
  %v384 = vmax.f32 %v346, 0.0
  %v385 = vmax.f32 %v348, 0.0
  %v386 = vmax.f32 %v239, 0.0
  %v387 = vmax.f32 %v241, 0.0
  %v388 = vmax.f32 %v352, 0.0
  %v389 = vmax.f32 %v354, 0.0
  %v390 = vmax.f32 %v245, 0.0
  %v391 = vmax.f32 %v247, 0.0
  %v392 = vmax.f32 %v358, 0.0
  %v393 = vmax.f32 %v360, 0.0
  %v394 = vld [vmem:[%s3] sm:$0xff]
  %v395 = vld [vmem:[%s3 + $0x8] sm:$0xff]
  %v396 = vld [vmem:[%s3 + $0x10] sm:$0xff]
  %v397 = vld [vmem:[%s3 + $0x18] sm:$0xff]
  %v398 = vld [vmem:[%s4] sm:$0xff]
  %v399 = vld [vmem:[%s4 + $0x8] sm:$0xff]
  %v400 = vld [vmem:[%s4 + $0x10] sm:$0xff]
  %v401 = vld [vmem:[%s4 + $0x18] sm:$0xff]
  %403 = vset.pattern.permute.xlu0 0
  %404 = vperm.xlu0 %403, %v398
  %v405 = vpop.permute.xlu0 %404
  %408 = vset.pattern.permute.xlu0 0
  %409 = vperm.xlu0 %408, %v399
  %v410 = vpop.permute.xlu0 %409
  %413 = vset.pattern.permute.xlu0 0
  %414 = vperm.xlu0 %413, %v400
  %v415 = vpop.permute.xlu0 %414
  %418 = vset.pattern.permute.xlu0 0
  %419 = vperm.xlu0 %418, %v401
  %v420 = vpop.permute.xlu0 %419
  %vm422 = vcmask 523264
  %v424 = vsel %vm422, %v394, 0
  %v427 = vsel %vm422, %v395, 0
  %v430 = vsel %vm422, %v396, 0
  %v433 = vsel %vm422, %v397, 0
  %435 = vmatprep.subr.mxu0 %v363
  %436 = vmatpush1.msra.mxu0 %v362
  %437 = vmatprep.subr.mxu0 %v367
  %438 = vmatpush1.msra.mxu0 %v366
  %439 = vmatprep.subr.mxu0 %v371
  %440 = vmatpush1.msra.mxu0 %v370
  %441 = vmatprep.subr.mxu0 %v375
  %442 = vmatpush1.msra.mxu0 %v374
  %443 = vmatprep.subr.mxu0 %v379
  %444 = vmatpush1.msra.mxu0 %v378
  %445 = vmatprep.subr.mxu0 %v383
  %446 = vmatpush1.msra.mxu0 %v382
  %447 = vmatprep.subr.mxu0 %v387
  %448 = vmatpush1.msra.mxu0 %v386
  %449 = vmatprep.subr.mxu0 %v391
  %450 = vmatpush1.msra.mxu0 %v390
  %451 = vmatprep.subr.mxu0 0.0
  %452 = vmatpush1.msra.mxu0 0.0
  %453 = vmatprep.subr.mxu0 0.0
  %454 = vmatpush1.msra.mxu0 0.0
  %455 = vmatprep.subr.mxu0 0.0
  %456 = vmatpush1.msra.mxu0 0.0
  %457 = vmatprep.subr.mxu0 0.0
  %458 = vmatpush1.msra.mxu0 0.0
  %459 = vmatprep.subr.mxu0 0.0
  %460 = vmatpush1.msra.mxu0 0.0
  %461 = vmatprep.subr.mxu0 0.0
  %462 = vmatpush1.msra.mxu0 0.0
  %463 = vmatprep.subr.mxu0 0.0
  %464 = vmatpush1.msra.mxu0 0.0
  %465 = vmatprep.subr.mxu0 0.0
  %466 = vmatpush1.msra.mxu0 0.0
  %467 = vmatprep.subr.mxu0 0.0
  %468 = vmatpush1.msra.mxu0 0.0
  %469 = vmatprep.subr.mxu0 0.0
  %470 = vmatpush1.msra.mxu0 0.0
  %471 = vmatprep.subr.mxu0 0.0
  %472 = vmatpush1.msra.mxu0 0.0
  %473 = vmatprep.subr.mxu0 0.0
  %474 = vmatpush1.msra.mxu0 0.0
  %475 = vmatprep.subr.mxu0 0.0
  %476 = vmatpush1.msra.mxu0 0.0
  %477 = vmatprep.subr.mxu0 0.0
  %478 = vmatpush1.msra.mxu0 0.0
  %479 = vmatprep.subr.mxu0 0.0
  %480 = vmatpush1.msra.mxu0 0.0
  %481 = vmatprep.subr.mxu0 0.0
  %482 = vmatpush1.msra.mxu0 0.0
  %483 = vmatprep.subr.mxu0 0.0
  %484 = vmatpush1.msra.mxu0 0.0
  %485 = vmatprep.subr.mxu0 0.0
  %486 = vmatpush1.msra.mxu0 0.0
  %487 = vmatprep.subr.mxu0 0.0
  %488 = vmatpush1.msra.mxu0 0.0
  %489 = vmatprep.subr.mxu0 0.0
  %490 = vmatpush1.msra.mxu0 0.0
  %491 = vmatprep.subr.mxu0 0.0
  %492 = vmatpush1.msra.mxu0 0.0
  %493 = vmatprep.subr.mxu0 0.0
  %494 = vmatpush1.msra.mxu0 0.0
  %495 = vmatprep.subr.mxu0 0.0
  %496 = vmatpush1.msra.mxu0 0.0
  %497 = vmatprep.subr.mxu0 0.0
  %498 = vmatpush1.msra.mxu0 0.0
  %499 = vmatprep.mubr.f32.mxu0 0.0
  %500 = vmatmul.mubr.f32.gmra.mrb[0].mxu0 %v424
  %v501 = vpop.f32.mrb[0].mxu0
  %v502 = vadd.f32 %v405, %v501
  %v503 = vpop.f32.mrb[0].mxu0
  %v504 = vadd.f32 %v405, %v503
  %505 = vmatprep.mubr.f32.mxu0 0.0
  %506 = vmatmul.mubr.f32.gmra.mrb[0].mxu0 %v427
  %v507 = vpop.f32.mrb[0].mxu0
  %v508 = vadd.f32 %v410, %v507
  %v509 = vpop.f32.mrb[0].mxu0
  %v510 = vadd.f32 %v410, %v509
  %511 = vmatprep.mubr.f32.mxu0 0.0
  %512 = vmatmul.mubr.f32.gmra.mrb[0].mxu0 %v430
  %v513 = vpop.f32.mrb[0].mxu0
  %v514 = vadd.f32 %v415, %v513
  %v515 = vpop.f32.mrb[0].mxu0
  %v516 = vadd.f32 %v415, %v515
  %517 = vmatprep.mubr.f32.mxu0 0.0
  %518 = vmatmul.mubr.f32.gmra.mrb[0].mxu0 %v433
  %v519 = vpop.f32.mrb[0].mxu0
  %v520 = vadd.f32 %v420, %v519
  %v521 = vpop.f32.mrb[0].mxu0
  %v522 = vadd.f32 %v420, %v521
  %523 = vdwg.mxu0
  %524 = vmatprep.subr.mxu0 %v365
  %525 = vmatpush1.msra.mxu0 %v364
  %526 = vmatprep.subr.mxu0 %v369
  %527 = vmatpush1.msra.mxu0 %v368
  %528 = vmatprep.subr.mxu0 %v373
  %529 = vmatpush1.msra.mxu0 %v372
  %530 = vmatprep.subr.mxu0 %v377
  %531 = vmatpush1.msra.mxu0 %v376
  %532 = vmatprep.subr.mxu0 %v381
  %533 = vmatpush1.msra.mxu0 %v380
  %534 = vmatprep.subr.mxu0 %v385
  %535 = vmatpush1.msra.mxu0 %v384
  %536 = vmatprep.subr.mxu0 %v389
  %537 = vmatpush1.msra.mxu0 %v388
  %538 = vmatprep.subr.mxu0 %v393
  %539 = vmatpush1.msra.mxu0 %v392
  %540 = vmatprep.subr.mxu0 0.0
  %541 = vmatpush1.msra.mxu0 0.0
  %542 = vmatprep.subr.mxu0 0.0
  %543 = vmatpush1.msra.mxu0 0.0
  %544 = vmatprep.subr.mxu0 0.0
  %545 = vmatpush1.msra.mxu0 0.0
  %546 = vmatprep.subr.mxu0 0.0
  %547 = vmatpush1.msra.mxu0 0.0
  %548 = vmatprep.subr.mxu0 0.0
  %549 = vmatpush1.msra.mxu0 0.0
  %550 = vmatprep.subr.mxu0 0.0
  %551 = vmatpush1.msra.mxu0 0.0
  %552 = vmatprep.subr.mxu0 0.0
  %553 = vmatpush1.msra.mxu0 0.0
  %554 = vmatprep.subr.mxu0 0.0
  %555 = vmatpush1.msra.mxu0 0.0
  %556 = vmatprep.subr.mxu0 0.0
  %557 = vmatpush1.msra.mxu0 0.0
  %558 = vmatprep.subr.mxu0 0.0
  %559 = vmatpush1.msra.mxu0 0.0
  %560 = vmatprep.subr.mxu0 0.0
  %561 = vmatpush1.msra.mxu0 0.0
  %562 = vmatprep.subr.mxu0 0.0
  %563 = vmatpush1.msra.mxu0 0.0
  %564 = vmatprep.subr.mxu0 0.0
  %565 = vmatpush1.msra.mxu0 0.0
  %566 = vmatprep.subr.mxu0 0.0
  %567 = vmatpush1.msra.mxu0 0.0
  %568 = vmatprep.subr.mxu0 0.0
  %569 = vmatpush1.msra.mxu0 0.0
  %570 = vmatprep.subr.mxu0 0.0
  %571 = vmatpush1.msra.mxu0 0.0
  %572 = vmatprep.subr.mxu0 0.0
  %573 = vmatpush1.msra.mxu0 0.0
  %574 = vmatprep.subr.mxu0 0.0
  %575 = vmatpush1.msra.mxu0 0.0
  %576 = vmatprep.subr.mxu0 0.0
  %577 = vmatpush1.msra.mxu0 0.0
  %578 = vmatprep.subr.mxu0 0.0
  %579 = vmatpush1.msra.mxu0 0.0
  %580 = vmatprep.subr.mxu0 0.0
  %581 = vmatpush1.msra.mxu0 0.0
  %582 = vmatprep.subr.mxu0 0.0
  %583 = vmatpush1.msra.mxu0 0.0
  %584 = vmatprep.subr.mxu0 0.0
  %585 = vmatpush1.msra.mxu0 0.0
  %586 = vmatprep.subr.mxu0 0.0
  %587 = vmatpush1.msra.mxu0 0.0
  %588 = vmatprep.mubr.f32.mxu0 0.0
  %589 = vmatmul.mubr.f32.gmra.mrb[0].mxu0 %v424
  %v590 = vpop.f32.mrb[0].mxu0
  %v591 = vadd.f32 %v405, %v590
  %v592 = vpop.f32.mrb[0].mxu0
  %v593 = vadd.f32 %v405, %v592
  %594 = vmatprep.mubr.f32.mxu0 0.0
  %595 = vmatmul.mubr.f32.gmra.mrb[0].mxu0 %v427
  %v596 = vpop.f32.mrb[0].mxu0
  %v597 = vadd.f32 %v410, %v596
  %v598 = vpop.f32.mrb[0].mxu0
  %v599 = vadd.f32 %v410, %v598
  %600 = vmatprep.mubr.f32.mxu0 0.0
  %601 = vmatmul.mubr.f32.gmra.mrb[0].mxu0 %v430
  %v602 = vpop.f32.mrb[0].mxu0
  %v603 = vadd.f32 %v415, %v602
  %v604 = vpop.f32.mrb[0].mxu0
  %v605 = vadd.f32 %v415, %v604
  %606 = vmatprep.mubr.f32.mxu0 0.0
  %607 = vmatmul.mubr.f32.gmra.mrb[0].mxu0 %v433
  %v608 = vpop.f32.mrb[0].mxu0
  %v609 = vadd.f32 %v420, %v608
  %v610 = vpop.f32.mrb[0].mxu0
  %v611 = vadd.f32 %v420, %v610
  %612 = vdwg.mxu0
  %v613 = vmax.f32 %v502, 0.0
  %v614 = vmax.f32 %v504, 0.0
  %v615 = vmax.f32 %v591, 0.0
  %v616 = vmax.f32 %v593, 0.0
  %v617 = vmax.f32 %v508, 0.0
  %v618 = vmax.f32 %v510, 0.0
  %v619 = vmax.f32 %v597, 0.0
  %v620 = vmax.f32 %v599, 0.0
  %v621 = vmax.f32 %v514, 0.0
  %v622 = vmax.f32 %v516, 0.0
  %v623 = vmax.f32 %v603, 0.0
  %v624 = vmax.f32 %v605, 0.0
  %v625 = vmax.f32 %v520, 0.0
  %v626 = vmax.f32 %v522, 0.0
  %v627 = vmax.f32 %v609, 0.0
  %v628 = vmax.f32 %v611, 0.0
  %v629 = vld [vmem:[%s5] sm:$0xff]
  %v630 = vld [vmem:[%s5 + $0x8] sm:$0xff]
  %v631 = vld [vmem:[%s6] sm:$0xff]
  %v632 = vld [vmem:[%s6 + $0x8] sm:$0xff]
  %634 = vset.pattern.permute.xlu0 0
  %635 = vperm.xlu0 %634, %v631
  %v636 = vpop.permute.xlu0 %635
  %639 = vset.pattern.permute.xlu0 0
  %640 = vperm.xlu0 %639, %v632
  %v641 = vpop.permute.xlu0 %640
  %vm643 = vcmask 261120
  %v645 = vsel %vm643, %v629, 0
  %v648 = vsel %vm643, %v630, 0
  %650 = vmatprep.subr.mxu0 %v614
  %651 = vmatpush1.msra.mxu0 %v613
  %652 = vmatprep.subr.mxu0 %v618
  %653 = vmatpush1.msra.mxu0 %v617
  %654 = vmatprep.subr.mxu0 %v622
  %655 = vmatpush1.msra.mxu0 %v621
  %656 = vmatprep.subr.mxu0 %v626
  %657 = vmatpush1.msra.mxu0 %v625
  %658 = vmatprep.subr.mxu0 0.0
  %659 = vmatpush1.msra.mxu0 0.0
  %660 = vmatprep.subr.mxu0 0.0
  %661 = vmatpush1.msra.mxu0 0.0
  %662 = vmatprep.subr.mxu0 0.0
  %663 = vmatpush1.msra.mxu0 0.0
  %664 = vmatprep.subr.mxu0 0.0
  %665 = vmatpush1.msra.mxu0 0.0
  %666 = vmatprep.subr.mxu0 0.0
  %667 = vmatpush1.msra.mxu0 0.0
  %668 = vmatprep.subr.mxu0 0.0
  %669 = vmatpush1.msra.mxu0 0.0
  %670 = vmatprep.subr.mxu0 0.0
  %671 = vmatpush1.msra.mxu0 0.0
  %672 = vmatprep.subr.mxu0 0.0
  %673 = vmatpush1.msra.mxu0 0.0
  %674 = vmatprep.subr.mxu0 0.0
  %675 = vmatpush1.msra.mxu0 0.0
  %676 = vmatprep.subr.mxu0 0.0
  %677 = vmatpush1.msra.mxu0 0.0
  %678 = vmatprep.subr.mxu0 0.0
  %679 = vmatpush1.msra.mxu0 0.0
  %680 = vmatprep.subr.mxu0 0.0
  %681 = vmatpush1.msra.mxu0 0.0
  %682 = vmatprep.subr.mxu0 0.0
  %683 = vmatpush1.msra.mxu0 0.0
  %684 = vmatprep.subr.mxu0 0.0
  %685 = vmatpush1.msra.mxu0 0.0
  %686 = vmatprep.subr.mxu0 0.0
  %687 = vmatpush1.msra.mxu0 0.0
  %688 = vmatprep.subr.mxu0 0.0
  %689 = vmatpush1.msra.mxu0 0.0
  %690 = vmatprep.subr.mxu0 0.0
  %691 = vmatpush1.msra.mxu0 0.0
  %692 = vmatprep.subr.mxu0 0.0
  %693 = vmatpush1.msra.mxu0 0.0
  %694 = vmatprep.subr.mxu0 0.0
  %695 = vmatpush1.msra.mxu0 0.0
  %696 = vmatprep.subr.mxu0 0.0
  %697 = vmatpush1.msra.mxu0 0.0
  %698 = vmatprep.subr.mxu0 0.0
  %699 = vmatpush1.msra.mxu0 0.0
  %700 = vmatprep.subr.mxu0 0.0
  %701 = vmatpush1.msra.mxu0 0.0
  %702 = vmatprep.subr.mxu0 0.0
  %703 = vmatpush1.msra.mxu0 0.0
  %704 = vmatprep.subr.mxu0 0.0
  %705 = vmatpush1.msra.mxu0 0.0
  %706 = vmatprep.subr.mxu0 0.0
  %707 = vmatpush1.msra.mxu0 0.0
  %708 = vmatprep.subr.mxu0 0.0
  %709 = vmatpush1.msra.mxu0 0.0
  %710 = vmatprep.subr.mxu0 0.0
  %711 = vmatpush1.msra.mxu0 0.0
  %712 = vmatprep.subr.mxu0 0.0
  %713 = vmatpush1.msra.mxu0 0.0
  %714 = vmatprep.mubr.f32.mxu0 0.0
  %715 = vmatmul.mubr.f32.gmra.mrb[0].mxu0 %v645
  %v716 = vpop.f32.mrb[0].mxu0
  %v717 = vadd.f32 %v636, %v716
  %v718 = vpop.f32.mrb[0].mxu0
  %v719 = vadd.f32 %v636, %v718
  %720 = vmatprep.mubr.f32.mxu0 0.0
  %721 = vmatmul.mubr.f32.gmra.mrb[0].mxu0 %v648
  %v722 = vpop.f32.mrb[0].mxu0
  %v723 = vadd.f32 %v641, %v722
  %v724 = vpop.f32.mrb[0].mxu0
  %v725 = vadd.f32 %v641, %v724
  %726 = vdwg.mxu0
  %727 = vmatprep.subr.mxu0 %v616
  %728 = vmatpush1.msra.mxu0 %v615
  %729 = vmatprep.subr.mxu0 %v620
  %730 = vmatpush1.msra.mxu0 %v619
  %731 = vmatprep.subr.mxu0 %v624
  %732 = vmatpush1.msra.mxu0 %v623
  %733 = vmatprep.subr.mxu0 %v628
  %734 = vmatpush1.msra.mxu0 %v627
  %735 = vmatprep.subr.mxu0 0.0
  %736 = vmatpush1.msra.mxu0 0.0
  %737 = vmatprep.subr.mxu0 0.0
  %738 = vmatpush1.msra.mxu0 0.0
  %739 = vmatprep.subr.mxu0 0.0
  %740 = vmatpush1.msra.mxu0 0.0
  %741 = vmatprep.subr.mxu0 0.0
  %742 = vmatpush1.msra.mxu0 0.0
  %743 = vmatprep.subr.mxu0 0.0
  %744 = vmatpush1.msra.mxu0 0.0
  %745 = vmatprep.subr.mxu0 0.0
  %746 = vmatpush1.msra.mxu0 0.0
  %747 = vmatprep.subr.mxu0 0.0
  %748 = vmatpush1.msra.mxu0 0.0
  %749 = vmatprep.subr.mxu0 0.0
  %750 = vmatpush1.msra.mxu0 0.0
  %751 = vmatprep.subr.mxu0 0.0
  %752 = vmatpush1.msra.mxu0 0.0
  %753 = vmatprep.subr.mxu0 0.0
  %754 = vmatpush1.msra.mxu0 0.0
  %755 = vmatprep.subr.mxu0 0.0
  %756 = vmatpush1.msra.mxu0 0.0
  %757 = vmatprep.subr.mxu0 0.0
  %758 = vmatpush1.msra.mxu0 0.0
  %759 = vmatprep.subr.mxu0 0.0
  %760 = vmatpush1.msra.mxu0 0.0
  %761 = vmatprep.subr.mxu0 0.0
  %762 = vmatpush1.msra.mxu0 0.0
  %763 = vmatprep.subr.mxu0 0.0
  %764 = vmatpush1.msra.mxu0 0.0
  %765 = vmatprep.subr.mxu0 0.0
  %766 = vmatpush1.msra.mxu0 0.0
  %767 = vmatprep.subr.mxu0 0.0
  %768 = vmatpush1.msra.mxu0 0.0
  %769 = vmatprep.subr.mxu0 0.0
  %770 = vmatpush1.msra.mxu0 0.0
  %771 = vmatprep.subr.mxu0 0.0
  %772 = vmatpush1.msra.mxu0 0.0
  %773 = vmatprep.subr.mxu0 0.0
  %774 = vmatpush1.msra.mxu0 0.0
  %775 = vmatprep.subr.mxu0 0.0
  %776 = vmatpush1.msra.mxu0 0.0
  %777 = vmatprep.subr.mxu0 0.0
  %778 = vmatpush1.msra.mxu0 0.0
  %779 = vmatprep.subr.mxu0 0.0
  %780 = vmatpush1.msra.mxu0 0.0
  %781 = vmatprep.subr.mxu0 0.0
  %782 = vmatpush1.msra.mxu0 0.0
  %783 = vmatprep.subr.mxu0 0.0
  %784 = vmatpush1.msra.mxu0 0.0
  %785 = vmatprep.subr.mxu0 0.0
  %786 = vmatpush1.msra.mxu0 0.0
  %787 = vmatprep.subr.mxu0 0.0
  %788 = vmatpush1.msra.mxu0 0.0
  %789 = vmatprep.subr.mxu0 0.0
  %790 = vmatpush1.msra.mxu0 0.0
  %791 = vmatprep.mubr.f32.mxu0 0.0
  %792 = vmatmul.mubr.f32.gmra.mrb[0].mxu0 %v645
  %v793 = vpop.f32.mrb[0].mxu0
  %v794 = vadd.f32 %v636, %v793
  %v795 = vpop.f32.mrb[0].mxu0
  %v796 = vadd.f32 %v636, %v795
  %797 = vmatprep.mubr.f32.mxu0 0.0
  %798 = vmatmul.mubr.f32.gmra.mrb[0].mxu0 %v648
  %v799 = vpop.f32.mrb[0].mxu0
  %v800 = vadd.f32 %v641, %v799
  %v801 = vpop.f32.mrb[0].mxu0
  %v802 = vadd.f32 %v641, %v801
  %803 = vdwg.mxu0
  %v804 = vmax.f32 %v717, 0.0
  %v805 = vmax.f32 %v719, 0.0
  %v806 = vmax.f32 %v794, 0.0
  %v807 = vmax.f32 %v796, 0.0
  %v808 = vmax.f32 %v723, 0.0
  %v809 = vmax.f32 %v725, 0.0
  %v810 = vmax.f32 %v800, 0.0
  %v811 = vmax.f32 %v802, 0.0
  %v812 = vld [vmem:[%s7] sm:$0x1]
  %v813 = vld [vmem:[#allocation2] sm:$0x1]
  %815 = vset.pattern.permute.xlu0 0
  %816 = vperm.xlu0 %815, %v813
  %v817 = vpop.permute.xlu0 %816
  %v819 = vlaneseq
  %v820 = vshrl.u32 %v819, 7
  %v821 = vsub.s32 0, %v820
  %v822 = vrot.slane %v817, %v821
  %vm823 = vcmask 130048
  %v825 = vsel %vm823, %v812, 0
  %827 = vmatprep.subr.mxu0 %v805
  %828 = vmatpush1.msra.mxu0 %v804
  %829 = vmatprep.subr.mxu0 %v809
  %830 = vmatpush1.msra.mxu0 %v808
  %831 = vmatprep.subr.mxu0 0.0
  %832 = vmatpush1.msra.mxu0 0.0
  %833 = vmatprep.subr.mxu0 0.0
  %834 = vmatpush1.msra.mxu0 0.0
  %835 = vmatprep.subr.mxu0 0.0
  %836 = vmatpush1.msra.mxu0 0.0
  %837 = vmatprep.subr.mxu0 0.0
  %838 = vmatpush1.msra.mxu0 0.0
  %839 = vmatprep.subr.mxu0 0.0
  %840 = vmatpush1.msra.mxu0 0.0
  %841 = vmatprep.subr.mxu0 0.0
  %842 = vmatpush1.msra.mxu0 0.0
  %843 = vmatprep.subr.mxu0 0.0
  %844 = vmatpush1.msra.mxu0 0.0
  %845 = vmatprep.subr.mxu0 0.0
  %846 = vmatpush1.msra.mxu0 0.0
  %847 = vmatprep.subr.mxu0 0.0
  %848 = vmatpush1.msra.mxu0 0.0
  %849 = vmatprep.subr.mxu0 0.0
  %850 = vmatpush1.msra.mxu0 0.0
  %851 = vmatprep.subr.mxu0 0.0
  %852 = vmatpush1.msra.mxu0 0.0
  %853 = vmatprep.subr.mxu0 0.0
  %854 = vmatpush1.msra.mxu0 0.0
  %855 = vmatprep.subr.mxu0 0.0
  %856 = vmatpush1.msra.mxu0 0.0
  %857 = vmatprep.subr.mxu0 0.0
  %858 = vmatpush1.msra.mxu0 0.0
  %859 = vmatprep.subr.mxu0 0.0
  %860 = vmatpush1.msra.mxu0 0.0
  %861 = vmatprep.subr.mxu0 0.0
  %862 = vmatpush1.msra.mxu0 0.0
  %863 = vmatprep.subr.mxu0 0.0
  %864 = vmatpush1.msra.mxu0 0.0
  %865 = vmatprep.subr.mxu0 0.0
  %866 = vmatpush1.msra.mxu0 0.0
  %867 = vmatprep.subr.mxu0 0.0
  %868 = vmatpush1.msra.mxu0 0.0
  %869 = vmatprep.subr.mxu0 0.0
  %870 = vmatpush1.msra.mxu0 0.0
  %871 = vmatprep.subr.mxu0 0.0
  %872 = vmatpush1.msra.mxu0 0.0
  %873 = vmatprep.subr.mxu0 0.0
  %874 = vmatpush1.msra.mxu0 0.0
  %875 = vmatprep.subr.mxu0 0.0
  %876 = vmatpush1.msra.mxu0 0.0
  %877 = vmatprep.subr.mxu0 0.0
  %878 = vmatpush1.msra.mxu0 0.0
  %879 = vmatprep.subr.mxu0 0.0
  %880 = vmatpush1.msra.mxu0 0.0
  %881 = vmatprep.subr.mxu0 0.0
  %882 = vmatpush1.msra.mxu0 0.0
  %883 = vmatprep.subr.mxu0 0.0
  %884 = vmatpush1.msra.mxu0 0.0
  %885 = vmatprep.subr.mxu0 0.0
  %886 = vmatpush1.msra.mxu0 0.0
  %887 = vmatprep.subr.mxu0 0.0
  %888 = vmatpush1.msra.mxu0 0.0
  %889 = vmatprep.subr.mxu0 0.0
  %890 = vmatpush1.msra.mxu0 0.0
  %891 = vmatprep.mubr.f32.mxu0 0.0
  %892 = vmatmul.mubr.f32.gmra.mrb[0].mxu0 %v825
  %v893 = vpop.f32.mrb[0].mxu0
  %v894 = vadd.f32 %v822, %v893
  %v895 = vpop.f32.mrb[0].mxu0
  %v896 = vadd.f32 %v822, %v895
  %897 = vdwg.mxu0
  %898 = vmatprep.subr.mxu0 %v807
  %899 = vmatpush1.msra.mxu0 %v806
  %900 = vmatprep.subr.mxu0 %v811
  %901 = vmatpush1.msra.mxu0 %v810
  %902 = vmatprep.subr.mxu0 0.0
  %903 = vmatpush1.msra.mxu0 0.0
  %904 = vmatprep.subr.mxu0 0.0
  %905 = vmatpush1.msra.mxu0 0.0
  %906 = vmatprep.subr.mxu0 0.0
  %907 = vmatpush1.msra.mxu0 0.0
  %908 = vmatprep.subr.mxu0 0.0
  %909 = vmatpush1.msra.mxu0 0.0
  %910 = vmatprep.subr.mxu0 0.0
  %911 = vmatpush1.msra.mxu0 0.0
  %912 = vmatprep.subr.mxu0 0.0
  %913 = vmatpush1.msra.mxu0 0.0
  %914 = vmatprep.subr.mxu0 0.0
  %915 = vmatpush1.msra.mxu0 0.0
  %916 = vmatprep.subr.mxu0 0.0
  %917 = vmatpush1.msra.mxu0 0.0
  %918 = vmatprep.subr.mxu0 0.0
  %919 = vmatpush1.msra.mxu0 0.0
  %920 = vmatprep.subr.mxu0 0.0
  %921 = vmatpush1.msra.mxu0 0.0
  %922 = vmatprep.subr.mxu0 0.0
  %923 = vmatpush1.msra.mxu0 0.0
  %924 = vmatprep.subr.mxu0 0.0
  %925 = vmatpush1.msra.mxu0 0.0
  %926 = vmatprep.subr.mxu0 0.0
  %927 = vmatpush1.msra.mxu0 0.0
  %928 = vmatprep.subr.mxu0 0.0
  %929 = vmatpush1.msra.mxu0 0.0
  %930 = vmatprep.subr.mxu0 0.0
  %931 = vmatpush1.msra.mxu0 0.0
  %932 = vmatprep.subr.mxu0 0.0
  %933 = vmatpush1.msra.mxu0 0.0
  %934 = vmatprep.subr.mxu0 0.0
  %935 = vmatpush1.msra.mxu0 0.0
  %936 = vmatprep.subr.mxu0 0.0
  %937 = vmatpush1.msra.mxu0 0.0
  %938 = vmatprep.subr.mxu0 0.0
  %939 = vmatpush1.msra.mxu0 0.0
  %940 = vmatprep.subr.mxu0 0.0
  %941 = vmatpush1.msra.mxu0 0.0
  %942 = vmatprep.subr.mxu0 0.0
  %943 = vmatpush1.msra.mxu0 0.0
  %944 = vmatprep.subr.mxu0 0.0
  %945 = vmatpush1.msra.mxu0 0.0
  %946 = vmatprep.subr.mxu0 0.0
  %947 = vmatpush1.msra.mxu0 0.0
  %948 = vmatprep.subr.mxu0 0.0
  %949 = vmatpush1.msra.mxu0 0.0
  %950 = vmatprep.subr.mxu0 0.0
  %951 = vmatpush1.msra.mxu0 0.0
  %952 = vmatprep.subr.mxu0 0.0
  %953 = vmatpush1.msra.mxu0 0.0
  %954 = vmatprep.subr.mxu0 0.0
  %955 = vmatpush1.msra.mxu0 0.0
  %956 = vmatprep.subr.mxu0 0.0
  %957 = vmatpush1.msra.mxu0 0.0
  %958 = vmatprep.subr.mxu0 0.0
  %959 = vmatpush1.msra.mxu0 0.0
  %960 = vmatprep.subr.mxu0 0.0
  %961 = vmatpush1.msra.mxu0 0.0
  %962 = vmatprep.mubr.f32.mxu0 0.0
  %963 = vmatmul.mubr.f32.gmra.mrb[0].mxu0 %v825
  %v964 = vpop.f32.mrb[0].mxu0
  %v965 = vadd.f32 %v822, %v964
  %v966 = vpop.f32.mrb[0].mxu0
  %v967 = vadd.f32 %v822, %v966
  %968 = vdwg.mxu0
  %v969 = vxor.u32 %v894, 2147483648
  %v970 = vxor.u32 %v896, 2147483648
  %v971 = vxor.u32 %v965, 2147483648
  %v972 = vxor.u32 %v967, 2147483648
  %v973 = vmul.f32 %v969, 1.442695
  %v974 = vpow.pop %v973
  %v975 = vmul.f32 %v970, 1.442695
  %v976 = vpow.pop %v975
  %v977 = vmul.f32 %v971, 1.442695
  %v978 = vpow.pop %v977
  %v979 = vmul.f32 %v972, 1.442695
  %v980 = vpow.pop %v979
  %v981 = vadd.f32 %v974, 1.0
  %v982 = vadd.f32 %v976, 1.0
  %v983 = vadd.f32 %v978, 1.0
  %v984 = vadd.f32 %v980, 1.0
  %v985 = vrcp.pop %v981
  %v986 = vmul.f32 1.0, %v985
  %v987 = vrcp.pop %v982
  %v988 = vmul.f32 1.0, %v987
  %v989 = vrcp.pop %v983
  %v990 = vmul.f32 1.0, %v989
  %v991 = vrcp.pop %v984
  %v992 = vmul.f32 1.0, %v991
  %v997 = vcombine.low %v986, %v988
  %v998 = vcombine.low %v990, %v992
  %v1000 = vunpack.c.l.s4 1966171168
  %v1001 = vunpack.c.0.s8 %v1000
  %v1002 = vlaneseq
  %v1003 = vshrl.u32 %v1002, 7
  %v1004 = vsub.s32 %v1001, %v1003
  %v1005 = vrot.slane %v997, %v1004
  %v1007 = vunpack.c.l.s4 1966171168
  %v1008 = vunpack.c.0.s8 %v1007
  %v1009 = vlaneseq
  %v1010 = vshrl.u32 %v1009, 7
  %v1011 = vsub.s32 %v1008, %v1010
  %v1012 = vrot.slane %v998, %v1011
  %v1013 = vcombine.low %v1005, %v1012
  %v1015 = vunpack.c.l.s4 1966171168
  %v1016 = vunpack.c.0.s8 %v1015
  %v1017 = vlaneseq
  %v1018 = vshrl.u32 %v1017, 7
  %v1019 = vsub.s32 %v1016, %v1018
  %v1020 = vrot.slane %v1013, %v1019
  %v1022 = vlaneseq
  %vm1023 = vcmp.ge.s32.totalorder %v1022, 0
  %vm1024 = vcmp.lt.s32.totalorder %v1022, 512
  %vm1025 = vmand %vm1023, %vm1024
  %1026 = vst.msk [vmem:[%s9] sm:$0xf] %vm1025, %v1020
  // Predicated region
  $region38: #{ann_forward.1} parent=0 // pred_check
    _
  $region39: #{ann_forward.1} parent=0 // pred_check_branch
    %1028 = sbr.rel (0) target = $region41
  $region40: #{ann_forward.1} parent=0 // pred_region
    _
  $region41: #{ann_forward.1} parent=0 // pred_fallthru
    _
  // Predicated region
  $region42: #{ann_forward.1} parent=0 // pred_check
    _
  $region43: #{ann_forward.1} parent=0 // pred_check_branch
    %1030 = sbr.rel (0) target = $region45
  $region44: #{ann_forward.1} parent=0 // pred_region
    _
  $region45: #{ann_forward.1} parent=0 // pred_fallthru
    _

</llo_original>
